<compile_context>
chip_gen: v7x
topology: tpu7x:2x2x1
jax: 0.10.0
libtpu: 0.0.40
codegen_flags: <defaults>
</compile_context>

<pallas_src>
import jax
import jax.numpy as jnp
from jax.experimental import pallas as pl
from jax.experimental.pallas import tpu as pltpu


def _affine_kernel(x_ref, g_ref, b_ref, o_ref):
    # Single unconditional fused multiply-add; the kernel is HBM-bandwidth
    # bound, so the VALU work is free filler under the vld/vst traffic.
    xf = x_ref[...].astype(jnp.float32)
    o_ref[...] = (xf * g_ref[...] + b_ref[...]).astype(o_ref.dtype)


def _choose_tile_rows(rows, lanes, itemsize, target_bytes=1 << 20):
    """Row tile: ~0.5-2 MiB per x block, multiple of 8 sublanes (f32)."""
    if rows % 8 != 0:
        # A block dim equal to the full array dim is always legal.
        return rows
    tile = max(1, target_bytes // max(1, lanes * itemsize))
    tile = min(tile, rows)
    tile = max(8, (tile // 8) * 8)
    return min(tile, rows)


def _apply_channel_affine(x, gamma, beta):
    N, C, H, W = x.shape
    rows, lanes = N * C, H * W          # H*W maps to the lane axis (lane-dense)
    x2 = x.reshape(rows, lanes)

    # Per-row (N*C, 1) affine params in f32 (compute in f32, cast on store).
    g_row = jnp.broadcast_to(
        gamma.astype(jnp.float32)[None, :], (N, C)).reshape(rows, 1)
    b_row = jnp.broadcast_to(
        beta.astype(jnp.float32)[None, :], (N, C)).reshape(rows, 1)

    tile_r = _choose_tile_rows(rows, lanes, x.dtype.itemsize)
    grid = (pl.cdiv(rows, tile_r),)

    out2 = pl.pallas_call(
        _affine_kernel,
        out_shape=jax.ShapeDtypeStruct(x2.shape, x2.dtype),
        grid_spec=pltpu.PrefetchScalarGridSpec(
            num_scalar_prefetch=0,
            grid=grid,
            in_specs=[
                pl.BlockSpec((tile_r, lanes), lambda i: (i, 0)),
                pl.BlockSpec((tile_r, 1), lambda i: (i, 0)),
                pl.BlockSpec((tile_r, 1), lambda i: (i, 0)),
            ],
            out_specs=pl.BlockSpec((tile_r, lanes), lambda i: (i, 0)),
        ),
        compiler_params=pltpu.CompilerParams(
            # Shard row tiles across both TCs on v7x; neutral on v5e/v6e.
            dimension_semantics=("parallel",),
            # Explicit VMEM budget (tiles are ~1 MiB; double-buffered in+out
            # stays well under v7x's 64 MiB physical / 32 MiB scoped VMEM).
            vmem_limit_bytes=32 * 1024 * 1024,
        ),
    )(x2, g_row, b_row)

    return out2.reshape(N, C, H, W)


def random_apply(x, gamma, beta, p, key):
    """RandomApply(fn=per-channel affine, p=p).

    The coin flip mirrors PyTorch's host-side `random.random() > p`: it is
    resolved on the host (outside any kernel), so the identity path returns x
    directly with zero HBM traffic and no kernel launch.
    """
    u = float(jax.random.uniform(key, (), jnp.float32))
    if u > p:
        return x
    return _apply_channel_affine(x, gamma, beta)


if __name__ == "__main__":
    key = jax.random.PRNGKey(0)
    k_x, k_coin = jax.random.split(key)

    N, C, H, W = 2, 4, 16, 16
    x = jax.random.normal(k_x, (N, C, H, W), dtype=jnp.float32)

    # Deterministic "fn" parameters (synthetic per-channel affine).
    gamma = 1.0 + 0.1 * jnp.arange(C, dtype=jnp.float32)
    beta = 0.01 * jnp.arange(C, dtype=jnp.float32)
    p = 0.5

    fn_ref = x * gamma[None, :, None, None] + beta[None, :, None, None]

    # 1) Force the apply path (p=1.0): exercises the Pallas kernel.
    out_apply = jax.block_until_ready(random_apply(x, gamma, beta, 1.0, k_coin))
    assert out_apply.shape == x.shape and out_apply.dtype == x.dtype
    assert jnp.allclose(out_apply, fn_ref, atol=1e-6), "apply-path mismatch"

    # 2) Force the identity path (p=0.0): no kernel launch, returns x as-is.
    out_id = jax.block_until_ready(random_apply(x, gamma, beta, 0.0, k_coin))
    assert jnp.allclose(out_id, x), "identity-path mismatch"

    # 3) Coin-flipped path (p=0.5), checked against the same host decision.
    out = jax.block_until_ready(random_apply(x, gamma, beta, p, k_coin))
    u = float(jax.random.uniform(k_coin, (), jnp.float32))
    ref = x if u > p else fn_ref
    assert jnp.allclose(out, ref, atol=1e-6), "coin-flip path mismatch"

    # NOTE: at this toy size (8x256 f32) the call is launch-overhead bound;
    # benchmark with production NCHW shapes before tuning further.
    print("KERNEL_OK")
</pallas_src>

<mosaic_0001>
module attributes {stable_mosaic.version = 11 : i64} {
  func.func @_affine_kernel(%arg0: i32, %arg1: memref<8x256xf32, #tpu.memory_space<vmem>>, %arg2: memref<8x1xf32, #tpu.memory_space<vmem>>, %arg3: memref<8x1xf32, #tpu.memory_space<vmem>>, %arg4: memref<8x256xf32, #tpu.memory_space<vmem>>) attributes {dimension_semantics = [#tpu.dimension_semantics<parallel>], iteration_bounds = array<i64: 1>, scalar_prefetch = 0 : i64, scratch_operands = 0 : i64, tpu.core_type = #tpu.core_type<tc>, window_params = [{transform_indices = @transform_0, window_bounds = array<i64: 8, 256>}, {transform_indices = @transform_1, window_bounds = array<i64: 8, 1>}, {transform_indices = @transform_2, window_bounds = array<i64: 8, 1>}, {transform_indices = @transform_3, window_bounds = array<i64: 8, 256>}]} {
    %c0 = arith.constant 0 : index
    %c0_0 = arith.constant 0 : index
    %0 = vector.load %arg1[%c0, %c0_0] : memref<8x256xf32, #tpu.memory_space<vmem>>, vector<8x256xf32>
    %c0_1 = arith.constant 0 : index
    %c0_2 = arith.constant 0 : index
    %1 = vector.load %arg2[%c0_1, %c0_2] : memref<8x1xf32, #tpu.memory_space<vmem>>, vector<8x1xf32>
    %2 = vector.broadcast %1 : vector<8x1xf32> to vector<8x256xf32>
    %3 = arith.mulf %0, %2 : vector<8x256xf32>
    %c0_3 = arith.constant 0 : index
    %c0_4 = arith.constant 0 : index
    %4 = vector.load %arg3[%c0_3, %c0_4] : memref<8x1xf32, #tpu.memory_space<vmem>>, vector<8x1xf32>
    %5 = vector.broadcast %4 : vector<8x1xf32> to vector<8x256xf32>
    %6 = arith.addf %3, %5 : vector<8x256xf32>
    %c0_5 = arith.constant 0 : index
    %c0_6 = arith.constant 0 : index
    %7 = vector.load %arg4[%c0_5, %c0_6] : memref<8x256xf32, #tpu.memory_space<vmem>>, vector<8x256xf32>
    tpu.vector_store %arg4[%c0_5, %c0_6], %6 {strides = array<i32>} : memref<8x256xf32, #tpu.memory_space<vmem>>, vector<8x256xf32>,
    return
  }
  func.func @transform_0(%arg0: i32) -> (i32, i32) {
    %c0_i32 = arith.constant 0 : i32
    %c0_i32_0 = arith.constant 0 : i32
    return %arg0, %c0_i32 : i32, i32
  }
  func.func @transform_1(%arg0: i32) -> (i32, i32) {
    %c0_i32 = arith.constant 0 : i32
    %c0_i32_0 = arith.constant 0 : i32
    return %arg0, %c0_i32 : i32, i32
  }
  func.func @transform_2(%arg0: i32) -> (i32, i32) {
    %c0_i32 = arith.constant 0 : i32
    %c0_i32_0 = arith.constant 0 : i32
    return %arg0, %c0_i32 : i32, i32
  }
  func.func @transform_3(%arg0: i32) -> (i32, i32) {
    %c0_i32 = arith.constant 0 : i32
    %c0_i32_0 = arith.constant 0 : i32
    return %arg0, %c0_i32 : i32, i32
  }
}

</mosaic_0001>

<llo_original>
// kernel: tpu_custom_call.1
$region0: #{tpu_custom_call.1}
  #allocation0 [shape = 'u32[]', space=smem, size = 0x4, offset = 0x4, fixed_abs, tag = 'smem constant byte address 0x4 - core index']
  #allocation1 [shape = 'u32[144,128]{1,0:T(1,128)}', space=vmem, size = 0x12000, scoped, tag = 'internal scratch']
  %s0 = inlined_call_operand.vmem [shape: f32[8,256], index: 0, kind: input, shape index: {}]
  %s1 = inlined_call_operand.vmem [shape: f32[8,1], index: 1, kind: input, shape index: {}]
  %s2 = inlined_call_operand.vmem [shape: f32[8,1], index: 2, kind: input, shape index: {}]
  %s3 = inlined_call_operand.hbm [shape: f32[8,256], index: 3, kind: output, shape index: {}]
  %s4 = sld [smem:[#allocation0]]
  $region22: #{tpu_custom_call.1} parent=0
    _
  %s6 = ssub.s32 1, %s4
  %s7 = scalar_select 0, %s6, %s4
  $region1: #{tpu_custom_call.1} parent=0
    #allocation2 [shape = 'u8[8192]{0}', space=vmem, size = 0x2000, scoped, tag = 'output window, operand 0, single buffered']
    #allocation3 [shape = 's32[1]{0}', space=sflag, size = 0x4, scoped, tag = 'scoped memory for tpu_custom_call.1']
    %8 = vsyncpa [#allocation3], 0
    // Predicated region
    $region2: #{tpu_custom_call.1} parent=1 // pred_check
      _
    $region3: #{tpu_custom_call.1} parent=1 // pred_check_branch
      %10 = sbr.rel (0) target = $region5
    $region4: #{tpu_custom_call.1} parent=1 // pred_region
      _
    $region5: #{tpu_custom_call.1} parent=1 // pred_fallthru
      _
    // Predicated region
    $region6: #{tpu_custom_call.1} parent=1 // pred_check
      _
    $region7: #{tpu_custom_call.1} parent=1 // pred_check_branch
      %12 = sbr.rel (0) target = $region9
    $region8: #{tpu_custom_call.1} parent=1 // pred_region
      _
    $region9: #{tpu_custom_call.1} parent=1 // pred_fallthru
      _
    // Predicated region
    $region10: #{tpu_custom_call.1} parent=1 // pred_check
      _
    $region11: #{tpu_custom_call.1} parent=1 // pred_check_branch
      %14 = sbr.rel (0) target = $region13
    $region12: #{tpu_custom_call.1} parent=1 // pred_region
      _
    $region13: #{tpu_custom_call.1} parent=1 // pred_fallthru
      _
    %v15 = vld [vmem:[%s0] sm:$0xff]
    %v16 = vld [vmem:[%s0 + $0x8] sm:$0xff]
    %v17 = vld [vmem:[%s1] sm:$0xff]
    %19 = vset.pattern.permute.xlu0 0
    %20 = vperm.xlu0 %19, %v17
    %v21 = vpop.permute.xlu0 %20
    %v23 = vmul.f32 %v15, %v21
    %v24 = vmul.f32 %v16, %v21
    %v25 = vld [vmem:[%s2] sm:$0xff]
    %27 = vset.pattern.permute.xlu0 0
    %28 = vperm.xlu0 %27, %v25
    %v29 = vpop.permute.xlu0 %28
    %v31 = vadd.f32 %v23, %v29
    %v32 = vadd.f32 %v24, %v29
    %33 = vst [vmem:[#allocation2] sm:$0xff] %v31
    %34 = vst [vmem:[#allocation2 + $0x8] sm:$0xff] %v32
    // Predicated region
    $region14: #{tpu_custom_call.1} parent=1 // pred_check
      _
    $region15: #{tpu_custom_call.1} parent=1 // pred_check_branch
      %36 = sbr.rel (0) target = $region17
    $region16: #{tpu_custom_call.1} parent=1 // pred_region
      %s38 = ssub.s32 256, 256
      %39 = vsyncadd [#allocation3], %s38
      %s41 = sshll.u32 [#allocation2], 4
      %s42 = int_to_ptr.vmem [resolvable:$true] %s41
      %44 = dma.vmem_to_hbm [thread:$0]  %s42, 256, %s3, [#allocation3]
    $region17: #{tpu_custom_call.1} parent=1 // pred_fallthru
      _
    // Predicated region
    $region18: #{tpu_custom_call.1} parent=1 // pred_check
      _
    $region19: #{tpu_custom_call.1} parent=1 // pred_check_branch
      %46 = sbr.rel (0) target = $region21
    $region20: #{tpu_custom_call.1} parent=1 // pred_region
      %47 = dma.done [#allocation3], 256
    $region21: #{tpu_custom_call.1} parent=1 // pred_fallthru
      _
    %48 = vsyncpa [#allocation3], 1

</llo_original>
